<compile_context>
chip_gen: v7x
topology: tpu7x:2x2x1
jax: 0.10.0
libtpu: 0.0.40
codegen_flags: <defaults>
</compile_context>

<pallas_src>
import jax
import jax.numpy as jnp
from jax import lax
from jax.experimental import pallas as pl
from jax.experimental.pallas import tpu as pltpu


def open_detector_kernel(x_ref, w1_ref, bw_ref, b2_ref, o_ref):
    """One batch tile.

    x_ref : [TB, D_in]  bf16 batch tile (batch on sublanes, features on lanes)
    w1_ref: [H, D_in]   bf16 first Linear weight (PyTorch [out, in] layout)
    bw_ref: [H, 2]      f32; column 0 = b1, column 1 = W2 (second Linear weight)
    b2_ref: [1, 1]      f32 second bias, SMEM scalar
    o_ref : [1, TB]     f32 lane-dense output tile (batch on the lane axis)
    """
    # h[H, TB] = W1 @ x^T : one MXU push, contracting D_in (last dim of both),
    # f32 accumulation.
    # TODO(synk): inspect pl.lower_as_mlir for a per-step vxpose of the [TB, D_in]
    # x tile; if one is emitted, benchmark the W1^T / [TB, H] orientation instead.
    h = lax.dot_general(
        w1_ref[...], x_ref[...],
        dimension_numbers=(((1,), (1,)), ((), ())),
        preferred_element_type=jnp.float32,
    )
    b1 = bw_ref[:, 0:1]                                   # [H, 1] broadcasts over lanes (batch)
    w2 = bw_ref[:, 1:2]                                   # [H, 1]
    h = jnp.maximum(h + b1, 0.0)                          # f32 bias + ReLU (VPU)
    # Second Linear (H -> 1): VPU multiply + sublane (XLU) reduction; result stays
    # lane-dense as [1, TB] (no N=1 MXU matmul, no masked column store).
    out = jnp.sum(h * w2, axis=0, keepdims=True)          # [1, TB] f32
    o_ref[...] = (out + b2_ref[0, 0]).astype(o_ref.dtype)


def _round_up(n, m):
    return ((n + m - 1) // m) * m


def open_detector_forward(x, w1, b1, w2, b2, *, batch_tile=4096,
                          compute_dtype=jnp.bfloat16):
    """x: [B, feature_dim + num_classes]; weights in PyTorch Linear layout.
    Returns [B]  ==  squeeze(Linear(ReLU(Linear(x))), -1).
    """
    # TODO(synk): the real end-state is fusing this tiny head into the upstream
    # kernel that produces the feature/logit concat (and emits bf16 directly),
    # eliminating the x HBM round trip entirely.
    B, d_in = x.shape
    H = w1.shape[0]

    # Matmul operands in bf16; bias/epilogue params stay f32.
    xc = x if x.dtype == compute_dtype else x.astype(compute_dtype)
    w1c = w1.astype(compute_dtype)
    bw = jnp.concatenate(
        [b1.reshape(H, 1), w2.reshape(H, 1)], axis=1).astype(jnp.float32)   # [H, 2]
    b2s = b2.reshape(1, 1).astype(jnp.float32)                              # SMEM scalar

    # Tile choice: large tiles amortize per-grid-step overhead; for B > 128 keep
    # at least 2 tiles so v7x's two TensorCores both get work. No padding of x:
    # the ragged edge block is handled (masked) by Pallas.
    if B <= 128:
        tb = B
    else:
        tb = max(128, min(batch_tile, _round_up(pl.cdiv(B, 2), 128)))
    grid = (pl.cdiv(B, tb),)

    cost = pl.CostEstimate(
        flops=2 * B * d_in * H + 3 * B * H,
        transcendentals=0,
        bytes_accessed=(xc.dtype.itemsize * B * d_in
                        + w1c.dtype.itemsize * H * d_in
                        + 4 * (2 * H + 1 + B)),
    )

    out = pl.pallas_call(
        open_detector_kernel,
        out_shape=jax.ShapeDtypeStruct((1, B), jnp.float32),
        grid=grid,
        in_specs=[
            pl.BlockSpec((tb, d_in), lambda i: (i, 0)),          # x tile (pipelined)
            pl.BlockSpec((H, d_in), lambda i: (0, 0)),           # W1 (VMEM resident)
            pl.BlockSpec((H, 2), lambda i: (0, 0)),              # packed [b1 | w2]
            pl.BlockSpec(memory_space=pltpu.MemorySpace.SMEM),   # b2 scalar
        ],
        out_specs=pl.BlockSpec((1, tb), lambda i: (0, i)),       # lane-dense output
        compiler_params=pltpu.CompilerParams(
            dimension_semantics=("parallel",),
        ),
        cost_estimate=cost,
    )(xc, w1c, bw, b2s)
    return out[0]


def _reference(x, w1, b1, w2, b2):
    return (jnp.maximum(x @ w1.T + b1, 0.0) @ w2.T + b2)[:, 0]


if __name__ == "__main__":
    feature_dim, num_classes, hidden_dim = 24, 8, 128
    d_in = feature_dim + num_classes

    key = jax.random.PRNGKey(0)
    kx, kx2, k1, k2, k3, k4 = jax.random.split(key, 6)

    # PyTorch-style init: U(-1/sqrt(fan_in), 1/sqrt(fan_in)), Linear layout [out, in].
    bound1 = 1.0 / (d_in ** 0.5)
    bound2 = 1.0 / (hidden_dim ** 0.5)
    w1 = jax.random.uniform(k1, (hidden_dim, d_in), jnp.float32, -bound1, bound1)
    b1 = jax.random.uniform(k2, (hidden_dim,), jnp.float32, -bound1, bound1)
    w2 = jax.random.uniform(k3, (1, hidden_dim), jnp.float32, -bound2, bound2)
    b2 = jax.random.uniform(k4, (1,), jnp.float32, -bound2, bound2)

    # Small batch (single-block path).
    batch = 8
    x = jax.random.normal(kx, (batch, d_in), jnp.float32)
    out = jax.block_until_ready(open_detector_forward(x, w1, b1, w2, b2))
    ref = _reference(x, w1, b1, w2, b2)
    assert out.shape == (batch,)
    # bf16 MXU inputs (f32 accumulation/epilogue) -> relaxed tolerance vs f32 ref.
    assert jnp.allclose(out, ref, atol=5e-2, rtol=5e-2)

    # Larger batch exercising the tiled / ragged-edge (no-pad) grid path.
    batch2 = 1000
    x2 = jax.random.normal(kx2, (batch2, d_in), jnp.float32)
    out2 = jax.block_until_ready(open_detector_forward(x2, w1, b1, w2, b2))
    ref2 = _reference(x2, w1, b1, w2, b2)
    assert out2.shape == (batch2,)
    assert jnp.allclose(out2, ref2, atol=5e-2, rtol=5e-2)
    assert bool(jnp.all(jnp.isfinite(out2)))

    print("KERNEL_OK")
</pallas_src>

<mosaic_0001>
module attributes {stable_mosaic.version = 11 : i64} {
  func.func @open_detector_kernel(%arg0: i32, %arg1: memref<8x32xbf16, #tpu.memory_space<vmem>>, %arg2: memref<128x32xbf16, #tpu.memory_space<vmem>>, %arg3: memref<128x2xf32, #tpu.memory_space<vmem>>, %arg4: memref<1x1xf32, #tpu.memory_space<smem>>, %arg5: memref<1x8xf32, #tpu.memory_space<vmem>>) attributes {dimension_semantics = [#tpu.dimension_semantics<parallel>], iteration_bounds = array<i64: 1>, scalar_prefetch = 0 : i64, scratch_operands = 0 : i64, tpu.core_type = #tpu.core_type<tc>, window_params = [{transform_indices = @transform_0, window_bounds = array<i64: 8, 32>}, {pipeline_mode = #tpu.pipeline_mode<synchronous>, transform_indices = @transform_1, window_bounds = array<i64: 128, 32>}, {pipeline_mode = #tpu.pipeline_mode<synchronous>, transform_indices = @transform_2, window_bounds = array<i64: 128, 2>}, {transform_indices = @transform_3, window_bounds = array<i64: 1, 1>}, {transform_indices = @transform_4, window_bounds = array<i64: 1, 8>}]} {
    %c0 = arith.constant 0 : index
    %c0_0 = arith.constant 0 : index
    %0 = vector.load %arg2[%c0, %c0_0] : memref<128x32xbf16, #tpu.memory_space<vmem>>, vector<128x32xbf16>
    %c0_1 = arith.constant 0 : index
    %c0_2 = arith.constant 0 : index
    %1 = vector.load %arg1[%c0_1, %c0_2] : memref<8x32xbf16, #tpu.memory_space<vmem>>, vector<8x32xbf16>
    %cst = arith.constant dense<0.000000e+00> : vector<128x8xf32>
    %2 = tpu.matmul %0, %1, %cst {dimension_numbers = #tpu.dot_dimension_numbers<[1], [1], [0], [0], [0, 0, 1, 0], [], []>} : vector<128x32xbf16>, vector<8x32xbf16>, vector<128x8xf32> -> vector<128x8xf32>
    %c0_3 = arith.constant 0 : index
    %c0_4 = arith.constant 0 : index
    %3 = vector.load %arg3[%c0_3, %c0_4] : memref<128x2xf32, #tpu.memory_space<vmem>>, vector<128x1xf32>
    %c0_5 = arith.constant 0 : index
    %c1 = arith.constant 1 : index
    %4 = vector.load %arg3[%c0_5, %c1] : memref<128x2xf32, #tpu.memory_space<vmem>>, vector<128x1xf32>
    %5 = vector.broadcast %3 : vector<128x1xf32> to vector<128x8xf32>
    %6 = arith.addf %2, %5 : vector<128x8xf32>
    %cst_6 = arith.constant 0.000000e+00 : f32
    %7 = vector.broadcast %cst_6 : f32 to vector<128x8xf32>
    %8 = arith.maximumf %6, %7 : vector<128x8xf32>
    %9 = vector.broadcast %4 : vector<128x1xf32> to vector<128x8xf32>
    %10 = arith.mulf %8, %9 : vector<128x8xf32>
    %cst_7 = arith.constant dense<0.000000e+00> : vector<8xf32>
    %11 = vector.multi_reduction <add>, %10, %cst_7 [0] : vector<128x8xf32> to vector<8xf32>
    %12 = vector.shape_cast %11 : vector<8xf32> to vector<1x8xf32>
    %c0_8 = arith.constant 0 : index
    %c0_9 = arith.constant 0 : index
    %13 = memref.load %arg4[%c0_8, %c0_9] : memref<1x1xf32, #tpu.memory_space<smem>>
    %14 = vector.broadcast %13 : f32 to vector<1x8xf32>
    %15 = arith.addf %12, %14 : vector<1x8xf32>
    %c0_10 = arith.constant 0 : index
    %c0_11 = arith.constant 0 : index
    %16 = vector.load %arg5[%c0_10, %c0_11] : memref<1x8xf32, #tpu.memory_space<vmem>>, vector<1x8xf32>
    tpu.vector_store %arg5[%c0_10, %c0_11], %15 {strides = array<i32>} : memref<1x8xf32, #tpu.memory_space<vmem>>, vector<1x8xf32>,
    return
  }
  func.func @transform_0(%arg0: i32) -> (i32, i32) {
    %c0_i32 = arith.constant 0 : i32
    %c0_i32_0 = arith.constant 0 : i32
    return %arg0, %c0_i32 : i32, i32
  }
  func.func @transform_1(%arg0: i32) -> (i32, i32) {
    %c0_i32 = arith.constant 0 : i32
    %c0_i32_0 = arith.constant 0 : i32
    %c0_i32_1 = arith.constant 0 : i32
    return %c0_i32, %c0_i32_0 : i32, i32
  }
  func.func @transform_2(%arg0: i32) -> (i32, i32) {
    %c0_i32 = arith.constant 0 : i32
    %c0_i32_0 = arith.constant 0 : i32
    %c0_i32_1 = arith.constant 0 : i32
    return %c0_i32, %c0_i32_0 : i32, i32
  }
  func.func @transform_3(%arg0: i32) -> (i32, i32) {
    %c0_i32 = arith.constant 0 : i32
    %c0_i32_0 = arith.constant 0 : i32
    %c0_i32_1 = arith.constant 0 : i32
    return %c0_i32, %c0_i32_0 : i32, i32
  }
  func.func @transform_4(%arg0: i32) -> (i32, i32) {
    %c0_i32 = arith.constant 0 : i32
    %c0_i32_0 = arith.constant 0 : i32
    return %c0_i32, %arg0 : i32, i32
  }
}

</mosaic_0001>

<llo_original>
// kernel: tpu_custom_call.1
$region0: #{tpu_custom_call.1}
  #allocation0 [shape = 'u32[]', space=smem, size = 0x4, offset = 0x4, fixed_abs, tag = 'smem constant byte address 0x4 - core index']
  #allocation1 [shape = 'u32[144,128]{1,0:T(1,128)}', space=vmem, size = 0x12000, scoped, tag = 'internal scratch']
  #allocation2 [shape = 'f32[1,1]{1,0:T(1,128)S(6)}', space=smem, size = 0x200, scoped, tag = 'scoped memory for tpu_custom_call.1']
  %s0 = inlined_call_operand.vmem [shape: bf16[8,32], index: 0, kind: input, shape index: {}]
  %s1 = inlined_call_operand.vmem [shape: bf16[128,32], index: 1, kind: input, shape index: {}]
  %s2 = inlined_call_operand.vmem [shape: f32[128,2], index: 2, kind: input, shape index: {}]
  %s3 = inlined_call_operand.<no memory space> [shape: f32[1,1], index: 3, kind: input, shape index: {}]
  %s4 = inlined_call_operand.hbm [shape: f32[1,8], index: 4, kind: output, shape index: {}]
  %s5 = sld [smem:[#allocation0]]
  $region26: #{tpu_custom_call.1} parent=0
    _
  %s7 = ssub.s32 1, %s5
  %s8 = scalar_select 0, %s7, %s5
  %9 = sst [smem:[#allocation2]] %s3
  $region1: #{tpu_custom_call.1} parent=0
    #allocation3 [shape = 'u8[512]{0}', space=vmem, size = 0x400, scoped, tag = 'output window, operand 0, single buffered']
    #allocation4 [shape = 's32[1]{0}', space=sflag, size = 0x4, scoped, tag = 'scoped memory for tpu_custom_call.1']
    %10 = vsyncpa [#allocation4], 0
    // Predicated region
    $region2: #{tpu_custom_call.1} parent=1 // pred_check
      _
    $region3: #{tpu_custom_call.1} parent=1 // pred_check_branch
      %12 = sbr.rel (0) target = $region5
    $region4: #{tpu_custom_call.1} parent=1 // pred_region
      _
    $region5: #{tpu_custom_call.1} parent=1 // pred_fallthru
      _
    // Predicated region
    $region6: #{tpu_custom_call.1} parent=1 // pred_check
      _
    $region7: #{tpu_custom_call.1} parent=1 // pred_check_branch
      %14 = sbr.rel (0) target = $region9
    $region8: #{tpu_custom_call.1} parent=1 // pred_region
      _
    $region9: #{tpu_custom_call.1} parent=1 // pred_fallthru
      _
    // Predicated region
    $region10: #{tpu_custom_call.1} parent=1 // pred_check
      _
    $region11: #{tpu_custom_call.1} parent=1 // pred_check_branch
      %16 = sbr.rel (0) target = $region13
    $region12: #{tpu_custom_call.1} parent=1 // pred_region
      _
    $region13: #{tpu_custom_call.1} parent=1 // pred_fallthru
      _
    // Predicated region
    $region14: #{tpu_custom_call.1} parent=1 // pred_check
      _
    $region15: #{tpu_custom_call.1} parent=1 // pred_check_branch
      %18 = sbr.rel (0) target = $region17
    $region16: #{tpu_custom_call.1} parent=1 // pred_region
      _
    $region17: #{tpu_custom_call.1} parent=1 // pred_fallthru
      _
    %v20 = vld [vmem:[%s1] sm:$0xf]
    %v21 = vld [vmem:[%s1 + $0x4] sm:$0xf]
    %v22 = vld [vmem:[%s1 + $0x8] sm:$0xf]
    %v23 = vld [vmem:[%s1 + $0xc] sm:$0xf]
    %v24 = vld [vmem:[%s1 + $0x10] sm:$0xf]
    %v25 = vld [vmem:[%s1 + $0x14] sm:$0xf]
    %v26 = vld [vmem:[%s1 + $0x18] sm:$0xf]
    %v27 = vld [vmem:[%s1 + $0x1c] sm:$0xf]
    %v28 = vld [vmem:[%s1 + $0x20] sm:$0xf]
    %v29 = vld [vmem:[%s1 + $0x24] sm:$0xf]
    %v30 = vld [vmem:[%s1 + $0x28] sm:$0xf]
    %v31 = vld [vmem:[%s1 + $0x2c] sm:$0xf]
    %v32 = vld [vmem:[%s1 + $0x30] sm:$0xf]
    %v33 = vld [vmem:[%s1 + $0x34] sm:$0xf]
    %v34 = vld [vmem:[%s1 + $0x38] sm:$0xf]
    %v35 = vld [vmem:[%s1 + $0x3c] sm:$0xf]
    %v36 = vld [vmem:[%s0] sm:$0xf]
    %v37 = vld [vmem:[%s2] sm:$0xff]
    %v38 = vld [vmem:[%s2 + $0x8] sm:$0xff]
    %v39 = vld [vmem:[%s2 + $0x10] sm:$0xff]
    %v40 = vld [vmem:[%s2 + $0x18] sm:$0xff]
    %v41 = vld [vmem:[%s2 + $0x20] sm:$0xff]
    %v42 = vld [vmem:[%s2 + $0x28] sm:$0xff]
    %v43 = vld [vmem:[%s2 + $0x30] sm:$0xff]
    %v44 = vld [vmem:[%s2 + $0x38] sm:$0xff]
    %v45 = vld [vmem:[%s2 + $0x40] sm:$0xff]
    %v46 = vld [vmem:[%s2 + $0x48] sm:$0xff]
    %v47 = vld [vmem:[%s2 + $0x50] sm:$0xff]
    %v48 = vld [vmem:[%s2 + $0x58] sm:$0xff]
    %v49 = vld [vmem:[%s2 + $0x60] sm:$0xff]
    %v50 = vld [vmem:[%s2 + $0x68] sm:$0xff]
    %v51 = vld [vmem:[%s2 + $0x70] sm:$0xff]
    %v52 = vld [vmem:[%s2 + $0x78] sm:$0xff]
    %54 = vset.pattern.permute.xlu0 0
    %55 = vperm.xlu0 %54, %v37
    %v56 = vpop.permute.xlu0 %55
    %59 = vset.pattern.permute.xlu0 0
    %60 = vperm.xlu0 %59, %v38
    %v61 = vpop.permute.xlu0 %60
    %64 = vset.pattern.permute.xlu0 0
    %65 = vperm.xlu0 %64, %v39
    %v66 = vpop.permute.xlu0 %65
    %69 = vset.pattern.permute.xlu0 0
    %70 = vperm.xlu0 %69, %v40
    %v71 = vpop.permute.xlu0 %70
    %74 = vset.pattern.permute.xlu0 0
    %75 = vperm.xlu0 %74, %v41
    %v76 = vpop.permute.xlu0 %75
    %79 = vset.pattern.permute.xlu0 0
    %80 = vperm.xlu0 %79, %v42
    %v81 = vpop.permute.xlu0 %80
    %84 = vset.pattern.permute.xlu0 0
    %85 = vperm.xlu0 %84, %v43
    %v86 = vpop.permute.xlu0 %85
    %89 = vset.pattern.permute.xlu0 0
    %90 = vperm.xlu0 %89, %v44
    %v91 = vpop.permute.xlu0 %90
    %94 = vset.pattern.permute.xlu0 0
    %95 = vperm.xlu0 %94, %v45
    %v96 = vpop.permute.xlu0 %95
    %99 = vset.pattern.permute.xlu0 0
    %100 = vperm.xlu0 %99, %v46
    %v101 = vpop.permute.xlu0 %100
    %104 = vset.pattern.permute.xlu0 0
    %105 = vperm.xlu0 %104, %v47
    %v106 = vpop.permute.xlu0 %105
    %109 = vset.pattern.permute.xlu0 0
    %110 = vperm.xlu0 %109, %v48
    %v111 = vpop.permute.xlu0 %110
    %114 = vset.pattern.permute.xlu0 0
    %115 = vperm.xlu0 %114, %v49
    %v116 = vpop.permute.xlu0 %115
    %119 = vset.pattern.permute.xlu0 0
    %120 = vperm.xlu0 %119, %v50
    %v121 = vpop.permute.xlu0 %120
    %124 = vset.pattern.permute.xlu0 0
    %125 = vperm.xlu0 %124, %v51
    %v126 = vpop.permute.xlu0 %125
    %129 = vset.pattern.permute.xlu0 0
    %130 = vperm.xlu0 %129, %v52
    %v131 = vpop.permute.xlu0 %130
    %v149 = vunpack.c.l.b16 %v20
    %v150 = vunpack.c.l.b16 %v21
    %v151 = vunpack.c.l.b16 %v22
    %v152 = vunpack.c.l.b16 %v23
    %v153 = vunpack.c.l.b16 %v24
    %v154 = vunpack.c.l.b16 %v25
    %v155 = vunpack.c.l.b16 %v26
    %v156 = vunpack.c.l.b16 %v27
    %v157 = vunpack.c.l.b16 %v28
    %v158 = vunpack.c.l.b16 %v29
    %v159 = vunpack.c.l.b16 %v30
    %v160 = vunpack.c.l.b16 %v31
    %v161 = vunpack.c.l.b16 %v32
    %v162 = vunpack.c.l.b16 %v33
    %v163 = vunpack.c.l.b16 %v34
    %v164 = vunpack.c.l.b16 %v35
    %v165 = vpack.c.b16 %v150, %v149
    %v166 = vpack.c.b16 %v152, %v151
    %v167 = vpack.c.b16 %v154, %v153
    %v168 = vpack.c.b16 %v156, %v155
    %v169 = vpack.c.b16 %v158, %v157
    %v170 = vpack.c.b16 %v160, %v159
    %v171 = vpack.c.b16 %v162, %v161
    %v172 = vpack.c.b16 %v164, %v163
    %vm173 = vcmask 261120
    %v175 = vsel %vm173, %v165, 0
    %v178 = vsel %vm173, %v166, 0
    %v181 = vsel %vm173, %v167, 0
    %v184 = vsel %vm173, %v168, 0
    %v187 = vsel %vm173, %v169, 0
    %v190 = vsel %vm173, %v170, 0
    %v193 = vsel %vm173, %v171, 0
    %v196 = vsel %vm173, %v172, 0
    %v199 = vsel %vm173, %v36, 0
    %201 = vmatprep.subr.bf16.mxu0 0
    %202 = vmatpush1.bf16.xpose.msra.mxu0 %v199
    %203 = vmatprep.subr.bf16.mxu0 0
    %204 = vmatpush1.bf16.xpose.msra.mxu0 0
    %205 = vmatprep.subr.bf16.mxu0 0
    %206 = vmatpush1.bf16.xpose.msra.mxu0 0
    %207 = vmatprep.subr.bf16.mxu0 0
    %208 = vmatpush1.bf16.xpose.msra.mxu0 0
    %209 = vmatprep.subr.bf16.mxu0 0
    %210 = vmatpush1.bf16.xpose.msra.mxu0 0
    %211 = vmatprep.subr.bf16.mxu0 0
    %212 = vmatpush1.bf16.xpose.msra.mxu0 0
    %213 = vmatprep.subr.bf16.mxu0 0
    %214 = vmatpush1.bf16.xpose.msra.mxu0 0
    %215 = vmatprep.subr.bf16.mxu0 0
    %216 = vmatpush1.bf16.xpose.msra.mxu0 0
    %217 = vmatprep.subr.bf16.mxu0 0
    %218 = vmatpush1.bf16.xpose.msra.mxu0 0
    %219 = vmatprep.subr.bf16.mxu0 0
    %220 = vmatpush1.bf16.xpose.msra.mxu0 0
    %221 = vmatprep.subr.bf16.mxu0 0
    %222 = vmatpush1.bf16.xpose.msra.mxu0 0
    %223 = vmatprep.subr.bf16.mxu0 0
    %224 = vmatpush1.bf16.xpose.msra.mxu0 0
    %225 = vmatprep.subr.bf16.mxu0 0
    %226 = vmatpush1.bf16.xpose.msra.mxu0 0
    %227 = vmatprep.subr.bf16.mxu0 0
    %228 = vmatpush1.bf16.xpose.msra.mxu0 0
    %229 = vmatprep.subr.bf16.mxu0 0
    %230 = vmatpush1.bf16.xpose.msra.mxu0 0
    %231 = vmatprep.subr.bf16.mxu0 0
    %232 = vmatpush1.bf16.xpose.msra.mxu0 0
    %233 = vmatprep.mubr.bf16.mxu0 0
    %234 = vmatmul.mubr.bf16.gmra.mrb[0].mxu0 %v175
    %v235 = vpop.f32.mrb[0].mxu0
    %v236 = vadd.f32 %v56, %v235
    %v237 = vpop.f32.mrb[0].mxu0
    %v238 = vpop.f32.mrb[0].mxu0
    %v239 = vadd.f32 %v61, %v238
    %v240 = vpop.f32.mrb[0].mxu0
    %241 = vmatprep.mubr.bf16.mxu0 0
    %242 = vmatmul.mubr.bf16.gmra.mrb[0].mxu0 %v178
    %v243 = vpop.f32.mrb[0].mxu0
    %v244 = vadd.f32 %v66, %v243
    %v245 = vpop.f32.mrb[0].mxu0
    %v246 = vpop.f32.mrb[0].mxu0
    %v247 = vadd.f32 %v71, %v246
    %v248 = vpop.f32.mrb[0].mxu0
    %249 = vmatprep.mubr.bf16.mxu0 0
    %250 = vmatmul.mubr.bf16.gmra.mrb[0].mxu0 %v181
    %v251 = vpop.f32.mrb[0].mxu0
    %v252 = vadd.f32 %v76, %v251
    %v253 = vpop.f32.mrb[0].mxu0
    %v254 = vpop.f32.mrb[0].mxu0
    %v255 = vadd.f32 %v81, %v254
    %v256 = vpop.f32.mrb[0].mxu0
    %257 = vmatprep.mubr.bf16.mxu0 0
    %258 = vmatmul.mubr.bf16.gmra.mrb[0].mxu0 %v184
    %v259 = vpop.f32.mrb[0].mxu0
    %v260 = vadd.f32 %v86, %v259
    %v261 = vpop.f32.mrb[0].mxu0
    %v262 = vpop.f32.mrb[0].mxu0
    %v263 = vadd.f32 %v91, %v262
    %v264 = vpop.f32.mrb[0].mxu0
    %265 = vmatprep.mubr.bf16.mxu0 0
    %266 = vmatmul.mubr.bf16.gmra.mrb[0].mxu0 %v187
    %v267 = vpop.f32.mrb[0].mxu0
    %v268 = vadd.f32 %v96, %v267
    %v269 = vpop.f32.mrb[0].mxu0
    %v270 = vpop.f32.mrb[0].mxu0
    %v271 = vadd.f32 %v101, %v270
    %v272 = vpop.f32.mrb[0].mxu0
    %273 = vmatprep.mubr.bf16.mxu0 0
    %274 = vmatmul.mubr.bf16.gmra.mrb[0].mxu0 %v190
    %v275 = vpop.f32.mrb[0].mxu0
    %v276 = vadd.f32 %v106, %v275
    %v277 = vpop.f32.mrb[0].mxu0
    %v278 = vpop.f32.mrb[0].mxu0
    %v279 = vadd.f32 %v111, %v278
    %v280 = vpop.f32.mrb[0].mxu0
    %281 = vmatprep.mubr.bf16.mxu0 0
    %282 = vmatmul.mubr.bf16.gmra.mrb[0].mxu0 %v193
    %v283 = vpop.f32.mrb[0].mxu0
    %v284 = vadd.f32 %v116, %v283
    %v285 = vpop.f32.mrb[0].mxu0
    %v286 = vpop.f32.mrb[0].mxu0
    %v287 = vadd.f32 %v121, %v286
    %v288 = vpop.f32.mrb[0].mxu0
    %289 = vmatprep.mubr.bf16.mxu0 0
    %290 = vmatmul.mubr.bf16.gmra.mrb[0].mxu0 %v196
    %v291 = vpop.f32.mrb[0].mxu0
    %v292 = vadd.f32 %v126, %v291
    %v293 = vpop.f32.mrb[0].mxu0
    %v294 = vpop.f32.mrb[0].mxu0
    %v295 = vadd.f32 %v131, %v294
    %v296 = vpop.f32.mrb[0].mxu0
    %297 = vdwg.mxu0
    %v298 = vmax.f32 %v236, 0.0
    %v299 = vmax.f32 %v239, 0.0
    %v300 = vmax.f32 %v244, 0.0
    %v301 = vmax.f32 %v247, 0.0
    %v302 = vmax.f32 %v252, 0.0
    %v303 = vmax.f32 %v255, 0.0
    %v304 = vmax.f32 %v260, 0.0
    %v305 = vmax.f32 %v263, 0.0
    %v306 = vmax.f32 %v268, 0.0
    %v307 = vmax.f32 %v271, 0.0
    %v308 = vmax.f32 %v276, 0.0
    %v309 = vmax.f32 %v279, 0.0
    %v310 = vmax.f32 %v284, 0.0
    %v311 = vmax.f32 %v287, 0.0
    %v312 = vmax.f32 %v292, 0.0
    %v313 = vmax.f32 %v295, 0.0
    %314 = vset.pattern.permute.xlu0 1
    %315 = vperm.xlu0 %314, %v37
    %v316 = vpop.permute.xlu0 %315
    %318 = vset.pattern.permute.xlu0 1
    %319 = vperm.xlu0 %318, %v38
    %v320 = vpop.permute.xlu0 %319
    %322 = vset.pattern.permute.xlu0 1
    %323 = vperm.xlu0 %322, %v39
    %v324 = vpop.permute.xlu0 %323
    %326 = vset.pattern.permute.xlu0 1
    %327 = vperm.xlu0 %326, %v40
    %v328 = vpop.permute.xlu0 %327
    %330 = vset.pattern.permute.xlu0 1
    %331 = vperm.xlu0 %330, %v41
    %v332 = vpop.permute.xlu0 %331
    %334 = vset.pattern.permute.xlu0 1
    %335 = vperm.xlu0 %334, %v42
    %v336 = vpop.permute.xlu0 %335
    %338 = vset.pattern.permute.xlu0 1
    %339 = vperm.xlu0 %338, %v43
    %v340 = vpop.permute.xlu0 %339
    %342 = vset.pattern.permute.xlu0 1
    %343 = vperm.xlu0 %342, %v44
    %v344 = vpop.permute.xlu0 %343
    %346 = vset.pattern.permute.xlu0 1
    %347 = vperm.xlu0 %346, %v45
    %v348 = vpop.permute.xlu0 %347
    %350 = vset.pattern.permute.xlu0 1
    %351 = vperm.xlu0 %350, %v46
    %v352 = vpop.permute.xlu0 %351
    %354 = vset.pattern.permute.xlu0 1
    %355 = vperm.xlu0 %354, %v47
    %v356 = vpop.permute.xlu0 %355
    %358 = vset.pattern.permute.xlu0 1
    %359 = vperm.xlu0 %358, %v48
    %v360 = vpop.permute.xlu0 %359
    %362 = vset.pattern.permute.xlu0 1
    %363 = vperm.xlu0 %362, %v49
    %v364 = vpop.permute.xlu0 %363
    %366 = vset.pattern.permute.xlu0 1
    %367 = vperm.xlu0 %366, %v50
    %v368 = vpop.permute.xlu0 %367
    %370 = vset.pattern.permute.xlu0 1
    %371 = vperm.xlu0 %370, %v51
    %v372 = vpop.permute.xlu0 %371
    %374 = vset.pattern.permute.xlu0 1
    %375 = vperm.xlu0 %374, %v52
    %v376 = vpop.permute.xlu0 %375
    %v378 = vmul.f32 %v298, %v316
    %v379 = vmul.f32 %v299, %v320
    %v380 = vmul.f32 %v300, %v324
    %v381 = vmul.f32 %v301, %v328
    %v382 = vmul.f32 %v302, %v332
    %v383 = vmul.f32 %v303, %v336
    %v384 = vmul.f32 %v304, %v340
    %v385 = vmul.f32 %v305, %v344
    %v386 = vmul.f32 %v306, %v348
    %v387 = vmul.f32 %v307, %v352
    %v388 = vmul.f32 %v308, %v356
    %v389 = vmul.f32 %v309, %v360
    %v390 = vmul.f32 %v310, %v364
    %v391 = vmul.f32 %v311, %v368
    %v392 = vmul.f32 %v312, %v372
    %v393 = vmul.f32 %v313, %v376
    %vm394 = vcmask 64512
    %v395 = vsel %vm394, %v378, 0.0
    %v396 = vsel %vm394, %v379, 0.0
    %v397 = vadd.f32 %v395, %v396
    %v398 = vsel %vm394, %v380, 0.0
    %v399 = vadd.f32 %v397, %v398
    %v400 = vsel %vm394, %v381, 0.0
    %v401 = vadd.f32 %v399, %v400
    %v402 = vsel %vm394, %v382, 0.0
    %v403 = vadd.f32 %v401, %v402
    %v404 = vsel %vm394, %v383, 0.0
    %v405 = vadd.f32 %v403, %v404
    %v406 = vsel %vm394, %v384, 0.0
    %v407 = vadd.f32 %v405, %v406
    %v408 = vsel %vm394, %v385, 0.0
    %v409 = vadd.f32 %v407, %v408
    %v410 = vsel %vm394, %v386, 0.0
    %v411 = vadd.f32 %v409, %v410
    %v412 = vsel %vm394, %v387, 0.0
    %v413 = vadd.f32 %v411, %v412
    %v414 = vsel %vm394, %v388, 0.0
    %v415 = vadd.f32 %v413, %v414
    %v416 = vsel %vm394, %v389, 0.0
    %v417 = vadd.f32 %v415, %v416
    %v418 = vsel %vm394, %v390, 0.0
    %v419 = vadd.f32 %v417, %v418
    %v420 = vsel %vm394, %v391, 0.0
    %v421 = vadd.f32 %v419, %v420
    %v422 = vsel %vm394, %v392, 0.0
    %v423 = vadd.f32 %v421, %v422
    %v424 = vsel %vm394, %v393, 0.0
    %v425 = vadd.f32 %v423, %v424
    %v426 = vrot.slane %v425, 4
    %v427 = vadd.f32 %v425, %v426
    %v428 = vrot.slane %v427, 2
    %v429 = vadd.f32 %v427, %v428
    %v430 = vrot.slane %v429, 1
    %v431 = vadd.f32 %v429, %v430
    %s432 = sld [smem:[#allocation2]]
    %v433 = vstv %s432
    %v434 = vadd.f32 %v431, %v433
    %vm435 = vcmask 57344
    %436 = vst.msk [vmem:[#allocation3] sm:$0x1] %vm435, %v434
    // Predicated region
    $region18: #{tpu_custom_call.1} parent=1 // pred_check
      _
    $region19: #{tpu_custom_call.1} parent=1 // pred_check_branch
      %438 = sbr.rel (0) target = $region21
    $region20: #{tpu_custom_call.1} parent=1 // pred_region
      %s440 = ssub.s32 16, 16
      %441 = vsyncadd [#allocation4], %s440
      %s443 = sshll.u32 [#allocation3], 4
      %s444 = int_to_ptr.vmem [resolvable:$true] %s443
      %446 = dma.vmem_to_hbm [thread:$0]  %s444, 16, %s4, [#allocation4]
    $region21: #{tpu_custom_call.1} parent=1 // pred_fallthru
      _
    // Predicated region
    $region22: #{tpu_custom_call.1} parent=1 // pred_check
      _
    $region23: #{tpu_custom_call.1} parent=1 // pred_check_branch
      %448 = sbr.rel (0) target = $region25
    $region24: #{tpu_custom_call.1} parent=1 // pred_region
      %449 = dma.done [#allocation4], 16
    $region25: #{tpu_custom_call.1} parent=1 // pred_fallthru
      _
    %450 = vsyncpa [#allocation4], 1

</llo_original>
